<compile_context>
chip_gen: v6e
topology: v6e:2x2x1
jax: 0.10.0
libtpu: 0.0.40
codegen_flags: <defaults>
</compile_context>

<pallas_src>
import functools

import jax
import jax.numpy as jnp
from jax.experimental import pallas as pl
from jax.experimental.pallas import tpu as pltpu


def _round_up(x, m):
    return ((x + m - 1) // m) * m


# --------------------- elementwise complex-combine kernel --------------------

def _combine_kernel(lhs_ref, rel_ref, time_ref, q_ref, frn_ref, *, rank_p):
    # lhs/rel/time refs: (tile_b, 2*rank_p) f32, rank_p a multiple of 128 (lane-aligned).
    # q_ref: (tile_b, 2*rank_p) bf16 query operand for the MXU matmul.
    # frn_ref: (tile_b, rank_p) f32 = sqrt(fr0^2 + fr1^2) for the 'n3' factor.
    R = rank_p
    l0 = lhs_ref[:, :R]
    l1 = lhs_ref[:, R:]
    r0 = rel_ref[:, :R]
    r1 = rel_ref[:, R:]
    t0 = time_ref[:, :R]
    t1 = time_ref[:, R:]

    fr0 = r0 * t0 - r1 * t1          # full_rel real
    fr1 = r1 * t0 + r0 * t1          # full_rel imag
    frn_ref[...] = jnp.sqrt(fr0 * fr0 + fr1 * fr1)

    q_ref[:, :R] = (l0 * fr0 - l1 * fr1).astype(q_ref.dtype)   # query real
    q_ref[:, R:] = (l1 * fr0 + l0 * fr1).astype(q_ref.dtype)   # query imag


def complex_combine(lhs_p, rel_p, tim_p, *, rank_p, tile_b):
    """Inputs [Bp, 2*rank_p] f32 -> (q bf16 [Bp, 2*rank_p], fr_norm f32 [Bp, rank_p])."""
    Bp, K = lhs_p.shape
    assert K == 2 * rank_p and Bp % tile_b == 0

    kernel = functools.partial(_combine_kernel, rank_p=rank_p)
    in_spec = pl.BlockSpec((tile_b, K), lambda i: (i, 0))

    q, frn = pl.pallas_call(
        kernel,
        out_shape=(jax.ShapeDtypeStruct((Bp, K), jnp.bfloat16),
                   jax.ShapeDtypeStruct((Bp, rank_p), jnp.float32)),
        grid_spec=pltpu.PrefetchScalarGridSpec(
            num_scalar_prefetch=0,
            grid=(Bp // tile_b,),
            in_specs=[in_spec, in_spec, in_spec],
            out_specs=(pl.BlockSpec((tile_b, K), lambda i: (i, 0)),
                       pl.BlockSpec((tile_b, rank_p), lambda i: (i, 0)))),
        compiler_params=pltpu.CompilerParams(
            dimension_semantics=("parallel",)),
    )(lhs_p, rel_p, tim_p)
    return q, frn


# -------------------------- scoring matmul (single K block) ------------------

def _score_kernel(q_ref, ent_ref, o_ref):
    # q_ref: (tm, K) bf16, ent_ref: (K, tn) bf16, o_ref: (tm, tn) f32.
    # 2*rank_p fits one K block -> no accumulator scratch / no K grid axis.
    o_ref[...] = jnp.dot(q_ref[...], ent_ref[...],
                         preferred_element_type=jnp.float32)


def score_matmul(q, ent_t, *, tm, tn):
    """q: [Bp, K] bf16, ent_t: [K, Np] bf16 -> scores [Bp, Np] f32."""
    Bp, K = q.shape
    K2, Np = ent_t.shape
    assert K == K2 and Bp % tm == 0 and Np % tn == 0

    return pl.pallas_call(
        _score_kernel,
        out_shape=jax.ShapeDtypeStruct((Bp, Np), jnp.float32),
        grid_spec=pltpu.PrefetchScalarGridSpec(
            num_scalar_prefetch=0,
            # Entity axis OUTER, batch axis INNER: the entity block index (0, j)
            # is constant across inner steps, so the big table is streamed from
            # HBM exactly once per forward.
            grid=(Np // tn, Bp // tm),
            in_specs=[pl.BlockSpec((tm, K), lambda j, i: (i, 0)),
                      pl.BlockSpec((K, tn), lambda j, i: (0, j))],
            out_specs=pl.BlockSpec((tm, tn), lambda j, i: (i, j))),
        compiler_params=pltpu.CompilerParams(
            dimension_semantics=("parallel", "parallel"),
            vmem_limit_bytes=40 * 1024 * 1024),
    )(q, ent_t)


# ------------------------------ tiling policy --------------------------------

def _choose_tiles(B, N, K):
    """Pick (tm, Bp, tn, Np). Budget keeps double-buffered VMEM well under the
    32 MiB scoped limit of v7x (the tightest generation)."""
    # Batch tile: pad to >=256 rows so the 256x256 MXU (v6e/v7x) is reasonably
    # occupied; entity-side HBM traffic dominates, so the extra zero rows are free.
    tm = 256 if B <= 256 else 512
    Bp = _round_up(B, tm)

    # Entity tile: large lane-dense output blocks (fewer ~0.35us grid steps),
    # scaled down as the single-K-block width grows.
    if K <= 512:
        tn = 2048
    elif K <= 1024:
        tn = 1024
    elif K <= 4096:
        tn = 512
    else:
        tn = 256
    n_min = _round_up(N, 128)
    tn = min(tn, n_min)
    # Keep at least 2 entity tiles so both v7x TensorCores get parallel work.
    if n_min >= 256 and n_min // tn < 2:
        tn = max(128, _round_up(n_min // 2, 128))
    Np = _round_up(N, tn)
    return tm, Bp, tn, Np


# ------------------------------ model wrapper --------------------------------

class TComplExTangoParams:
    """Deterministically initialized TComplEx embedding tables (N(0,1)*init_size)."""

    def __init__(self, key, num_ent, num_rel, num_ts, rank, init_size=1e-2):
        k_e, k_r, k_t = jax.random.split(key, 3)
        self.rank = rank
        self.rank_p = _round_up(rank, 128)           # lane-aligned complex half width
        self.ent = jax.random.normal(k_e, (num_ent, 2 * rank), jnp.float32) * init_size
        self.rel = jax.random.normal(k_r, (num_rel, 2 * rank), jnp.float32) * init_size
        self.tem = jax.random.normal(k_t, (num_ts, 2 * rank), jnp.float32) * init_size
        self._scoring_cache = None                   # ((tn, Np), bf16 table)

    def scoring_table(self, tn, Np):
        """Padded + transposed + bf16 entity table [2*rank_p, Np], computed once and
        reused across forward calls (the pad/concat/transpose is two full HBM passes
        over the largest array, so it must not run per call)."""
        # TODO(synk): invalidate this cache whenever self.ent is updated during training.
        if self._scoring_cache is None or self._scoring_cache[0] != (tn, Np):
            rank, rank_p = self.rank, self.rank_p
            N = self.ent.shape[0]
            e0 = jnp.pad(self.ent[:, :rank], ((0, Np - N), (0, rank_p - rank)))
            e1 = jnp.pad(self.ent[:, rank:], ((0, Np - N), (0, rank_p - rank)))
            tbl = jnp.concatenate([e0, e1], axis=1).T.astype(jnp.bfloat16)
            self._scoring_cache = ((tn, Np), jax.block_until_ready(tbl))
        return self._scoring_cache[1]


def _pad_halves(a, rank, rank_p, rows_to):
    """[rows, 2*rank] -> [rows_to, 2*rank_p]; real/imag halves zero-padded separately."""
    rows = a.shape[0]
    a0 = jnp.pad(a[:, :rank], ((0, rows_to - rows), (0, rank_p - rank)))
    a1 = jnp.pad(a[:, rank:], ((0, rows_to - rows), (0, rank_p - rank)))
    return jnp.concatenate([a0, a1], axis=1)


def tcomplex_tango_forward(params: TComplExTangoParams, x, *, no_time_emb=False):
    """x: int32 [B, 4] columns = (head, rel, tail, time). Returns (scores [B, N_ent], factors)."""
    rank, rank_p = params.rank, params.rank_p
    K = 2 * rank_p
    B = x.shape[0]
    N = params.ent.shape[0]

    # --- embedding gathers (glue, plain JAX; sparse nn.Embedding lookup) ---
    lhs = jnp.take(params.ent, x[:, 0], axis=0)
    rel = jnp.take(params.rel, x[:, 1], axis=0)
    rhs = jnp.take(params.ent, x[:, 2], axis=0)
    tim = jnp.take(params.tem, x[:, 3], axis=0)

    tm, Bp, tn, Np = _choose_tiles(B, N, K)

    # --- query-side complex combine (Pallas elementwise kernel, bf16 q out) ---
    lhs_p = _pad_halves(lhs, rank, rank_p, Bp)
    rel_p = _pad_halves(rel, rank, rank_p, Bp)
    tim_p = _pad_halves(tim, rank, rank_p, Bp)
    q_bf16, frn_p = complex_combine(lhs_p, rel_p, tim_p, rank_p=rank_p, tile_b=tm)

    # --- scores = [q_re | q_im] @ [E_re | E_im]^T (Pallas MXU, bf16 ops, f32 acc) ---
    ent_t = params.scoring_table(tn, Np)          # cached, not rebuilt per call
    scores_p = score_matmul(q_bf16, ent_t, tm=tm, tn=tn)
    # TODO(synk): downstream consumers could take the padded [Bp, Np] scores directly
    # (masking padded columns) to avoid this extra B x N copy.
    scores = scores_p[:B, :N]

    # --- factors (small elementwise glue, matches the PyTorch dict) ---
    l0, l1 = lhs[:, :rank], lhs[:, rank:]
    h0, h1 = rhs[:, :rank], rhs[:, rank:]
    factors = {
        'n3': (jnp.sqrt(l0 ** 2 + l1 ** 2),
               frn_p[:B, :rank],                  # sqrt(fr0^2+fr1^2) from the kernel
               jnp.sqrt(h0 ** 2 + h1 ** 2)),
        'lambda3': params.tem[:-1] if no_time_emb else params.tem,
    }
    # TODO(synk): fit/predict/forward_over_time wrappers are not ported (forward only).
    return scores, factors


# -------------------------------- test / demo --------------------------------

if __name__ == "__main__":
    key = jax.random.PRNGKey(0)
    k_param, k_samp = jax.random.split(key)

    NUM_ENT, NUM_REL, NUM_TS = 200, 40, 30   # exercises entity-dim padding (200 -> 256)
    RANK = 100                               # exercises rank padding (100 -> 128)
    BATCH = 20                               # exercises batch padding (20 -> 256)
    INIT_SIZE = 0.1

    params = TComplExTangoParams(k_param, NUM_ENT, NUM_REL, NUM_TS, RANK, INIT_SIZE)

    kh, kr, kt, ktm = jax.random.split(k_samp, 4)
    x = jnp.stack([
        jax.random.randint(kh, (BATCH,), 0, NUM_ENT),
        jax.random.randint(kr, (BATCH,), 0, NUM_REL),
        jax.random.randint(kt, (BATCH,), 0, NUM_ENT),
        jax.random.randint(ktm, (BATCH,), 0, NUM_TS),
    ], axis=1).astype(jnp.int32)

    scores, factors = tcomplex_tango_forward(params, x, no_time_emb=False)
    scores = jax.block_until_ready(scores)

    # ---- pure-JAX f32 reference (mirrors the PyTorch forward) ----
    rank = RANK
    lhs = params.ent[x[:, 0]]
    rel = params.rel[x[:, 1]]
    rhs = params.ent[x[:, 2]]
    tim = params.tem[x[:, 3]]
    l0, l1 = lhs[:, :rank], lhs[:, rank:]
    r0, r1 = rel[:, :rank], rel[:, rank:]
    h0, h1 = rhs[:, :rank], rhs[:, rank:]
    t0, t1 = tim[:, :rank], tim[:, rank:]
    e0, e1 = params.ent[:, :rank], params.ent[:, rank:]
    fr0 = r0 * t0 - r1 * t1
    fr1 = r1 * t0 + r0 * t1
    ref_scores = (l0 * fr0 - l1 * fr1) @ e0.T + (l1 * fr0 + l0 * fr1) @ e1.T

    assert scores.shape == (BATCH, NUM_ENT), scores.shape
    # bf16 operands with f32 accumulation -> ~1e-5 absolute / <1% relative error here.
    assert jnp.allclose(scores, ref_scores, rtol=5e-2, atol=5e-4), (
        float(jnp.max(jnp.abs(scores - ref_scores))))

    # factors: elementwise parts are computed in f32 and should match tightly
    assert jnp.allclose(factors['n3'][0], jnp.sqrt(l0 ** 2 + l1 ** 2), rtol=1e-5, atol=1e-6)
    assert jnp.allclose(factors['n3'][1], jnp.sqrt(fr0 ** 2 + fr1 ** 2), rtol=1e-5, atol=1e-6)
    assert jnp.allclose(factors['n3'][2], jnp.sqrt(h0 ** 2 + h1 ** 2), rtol=1e-5, atol=1e-6)
    assert factors['n3'][1].shape == (BATCH, RANK)
    assert factors['lambda3'].shape == (NUM_TS, 2 * RANK)

    print("KERNEL_OK")
</pallas_src>

<mosaic_0001>
module attributes {stable_mosaic.version = 11 : i64} {
  func.func @_combine_kernel(%arg0: i32, %arg1: memref<256x256xf32, #tpu.memory_space<vmem>>, %arg2: memref<256x256xf32, #tpu.memory_space<vmem>>, %arg3: memref<256x256xf32, #tpu.memory_space<vmem>>, %arg4: memref<256x256xbf16, #tpu.memory_space<vmem>>, %arg5: memref<256x128xf32, #tpu.memory_space<vmem>>) attributes {dimension_semantics = [#tpu.dimension_semantics<parallel>], iteration_bounds = array<i64: 1>, scalar_prefetch = 0 : i64, scratch_operands = 0 : i64, tpu.core_type = #tpu.core_type<tc>, window_params = [{transform_indices = @transform_0, window_bounds = array<i64: 256, 256>}, {transform_indices = @transform_1, window_bounds = array<i64: 256, 256>}, {transform_indices = @transform_2, window_bounds = array<i64: 256, 256>}, {transform_indices = @transform_3, window_bounds = array<i64: 256, 256>}, {transform_indices = @transform_4, window_bounds = array<i64: 256, 128>}]} {
    %c0 = arith.constant 0 : index
    %c0_0 = arith.constant 0 : index
    %0 = vector.load %arg1[%c0, %c0_0] : memref<256x256xf32, #tpu.memory_space<vmem>>, vector<256x128xf32>
    %c0_1 = arith.constant 0 : index
    %c128 = arith.constant 128 : index
    %1 = vector.load %arg1[%c0_1, %c128] : memref<256x256xf32, #tpu.memory_space<vmem>>, vector<256x128xf32>
    %c0_2 = arith.constant 0 : index
    %c0_3 = arith.constant 0 : index
    %2 = vector.load %arg2[%c0_2, %c0_3] : memref<256x256xf32, #tpu.memory_space<vmem>>, vector<256x128xf32>
    %c0_4 = arith.constant 0 : index
    %c128_5 = arith.constant 128 : index
    %3 = vector.load %arg2[%c0_4, %c128_5] : memref<256x256xf32, #tpu.memory_space<vmem>>, vector<256x128xf32>
    %c0_6 = arith.constant 0 : index
    %c0_7 = arith.constant 0 : index
    %4 = vector.load %arg3[%c0_6, %c0_7] : memref<256x256xf32, #tpu.memory_space<vmem>>, vector<256x128xf32>
    %c0_8 = arith.constant 0 : index
    %c128_9 = arith.constant 128 : index
    %5 = vector.load %arg3[%c0_8, %c128_9] : memref<256x256xf32, #tpu.memory_space<vmem>>, vector<256x128xf32>
    %6 = arith.mulf %2, %4 : vector<256x128xf32>
    %7 = arith.mulf %3, %5 : vector<256x128xf32>
    %8 = arith.subf %6, %7 : vector<256x128xf32>
    %9 = arith.mulf %3, %4 : vector<256x128xf32>
    %10 = arith.mulf %2, %5 : vector<256x128xf32>
    %11 = arith.addf %9, %10 : vector<256x128xf32>
    %12 = arith.mulf %8, %8 : vector<256x128xf32>
    %13 = arith.mulf %11, %11 : vector<256x128xf32>
    %14 = arith.addf %12, %13 : vector<256x128xf32>
    %15 = math.sqrt %14 : vector<256x128xf32>
    %c0_10 = arith.constant 0 : index
    %c0_11 = arith.constant 0 : index
    %16 = vector.load %arg5[%c0_10, %c0_11] : memref<256x128xf32, #tpu.memory_space<vmem>>, vector<256x128xf32>
    tpu.vector_store %arg5[%c0_10, %c0_11], %15 {strides = array<i32>} : memref<256x128xf32, #tpu.memory_space<vmem>>, vector<256x128xf32>,
    %17 = arith.mulf %0, %8 : vector<256x128xf32>
    %18 = arith.mulf %1, %11 : vector<256x128xf32>
    %19 = arith.subf %17, %18 : vector<256x128xf32>
    %20 = arith.truncf %19 : vector<256x128xf32> to vector<256x128xbf16>
    %c0_12 = arith.constant 0 : index
    %c0_13 = arith.constant 0 : index
    %21 = vector.load %arg4[%c0_12, %c0_13] : memref<256x256xbf16, #tpu.memory_space<vmem>>, vector<256x128xbf16>
    tpu.vector_store %arg4[%c0_12, %c0_13], %20 {strides = array<i32>} : memref<256x256xbf16, #tpu.memory_space<vmem>>, vector<256x128xbf16>,
    %22 = arith.mulf %1, %8 : vector<256x128xf32>
    %23 = arith.mulf %0, %11 : vector<256x128xf32>
    %24 = arith.addf %22, %23 : vector<256x128xf32>
    %25 = arith.truncf %24 : vector<256x128xf32> to vector<256x128xbf16>
    %c0_14 = arith.constant 0 : index
    %c128_15 = arith.constant 128 : index
    %26 = vector.load %arg4[%c0_14, %c128_15] : memref<256x256xbf16, #tpu.memory_space<vmem>>, vector<256x128xbf16>
    tpu.vector_store %arg4[%c0_14, %c128_15], %25 {strides = array<i32>} : memref<256x256xbf16, #tpu.memory_space<vmem>>, vector<256x128xbf16>,
    return
  }
  func.func @transform_0(%arg0: i32) -> (i32, i32) {
    %c0_i32 = arith.constant 0 : i32
    %c0_i32_0 = arith.constant 0 : i32
    return %arg0, %c0_i32 : i32, i32
  }
  func.func @transform_1(%arg0: i32) -> (i32, i32) {
    %c0_i32 = arith.constant 0 : i32
    %c0_i32_0 = arith.constant 0 : i32
    return %arg0, %c0_i32 : i32, i32
  }
  func.func @transform_2(%arg0: i32) -> (i32, i32) {
    %c0_i32 = arith.constant 0 : i32
    %c0_i32_0 = arith.constant 0 : i32
    return %arg0, %c0_i32 : i32, i32
  }
  func.func @transform_3(%arg0: i32) -> (i32, i32) {
    %c0_i32 = arith.constant 0 : i32
    %c0_i32_0 = arith.constant 0 : i32
    return %arg0, %c0_i32 : i32, i32
  }
  func.func @transform_4(%arg0: i32) -> (i32, i32) {
    %c0_i32 = arith.constant 0 : i32
    %c0_i32_0 = arith.constant 0 : i32
    return %arg0, %c0_i32 : i32, i32
  }
}

</mosaic_0001>

<llo_original>
// kernel: tpu_custom_call.1
$region0: #{tpu_custom_call.1}
  #allocation0 [shape = 'u32[]', space=smem, size = 0x4, offset = 0x4, fixed_abs, tag = 'smem constant byte address 0x4 - core index']
  #allocation1 [shape = 'u32[144,128]{1,0:T(1,128)}', space=vmem, size = 0x12000, scoped, tag = 'internal scratch']
  %s0 = inlined_call_operand.hbm [shape: f32[256,256], index: 0, kind: input, shape index: {}]
  %s1 = inlined_call_operand.hbm [shape: f32[256,256], index: 1, kind: input, shape index: {}]
  %s2 = inlined_call_operand.hbm [shape: f32[256,256], index: 2, kind: input, shape index: {}]
  %s3 = inlined_call_operand.hbm [shape: bf16[256,256], index: 3, kind: output, shape index: {0}]
  %s4 = inlined_call_operand.hbm [shape: f32[256,128], index: 4, kind: output, shape index: {1}]
  %5 = xla_tuple %s3, %s4
  %s6 = sld [smem:[#allocation0]]
  $region42: #{tpu_custom_call.1} parent=0
    _
  %s8 = ssub.s32 1, %s6
  %s9 = scalar_select 0, %s8, %s6
  $region1: #{tpu_custom_call.1} parent=0
    #allocation2 [shape = 'u8[262144]{0}', space=vmem, size = 0x40000, scoped, tag = 'input window, operand 0, single buffered']
    #allocation3 [shape = 's32[1]{0}', space=sflag, size = 0x4, scoped, tag = 'scoped memory for tpu_custom_call.1']
    #allocation4 [shape = 's32[1]{0}', space=sflag, size = 0x4, scoped, tag = 'scoped memory for tpu_custom_call.1']
    #allocation5 [shape = 'u8[262144]{0}', space=vmem, size = 0x40000, scoped, tag = 'input window, operand 1, single buffered']
    #allocation6 [shape = 's32[1]{0}', space=sflag, size = 0x4, scoped, tag = 'scoped memory for tpu_custom_call.1']
    #allocation7 [shape = 'u8[262144]{0}', space=vmem, size = 0x40000, scoped, tag = 'input window, operand 2, single buffered']
    #allocation8 [shape = 'u8[131072]{0}', space=vmem, size = 0x20000, scoped, tag = 'output window, operand 0, single buffered']
    #allocation9 [shape = 'u8[131072]{0}', space=vmem, size = 0x20000, scoped, tag = 'output window, operand 1, single buffered']
    #allocation10 [shape = 's32[1]{0}', space=sflag, size = 0x4, scoped, tag = 'scoped memory for tpu_custom_call.1']
    %10 = vsyncpa [#allocation3], 0
    %11 = vsyncpa [#allocation6], 0
    %12 = vsyncpa [#allocation4], 0
    %13 = vsyncpa [#allocation10], 0
    // Predicated region
    $region2: #{tpu_custom_call.1} parent=1 // pred_check
      _
    $region3: #{tpu_custom_call.1} parent=1 // pred_check_branch
      %15 = sbr.rel (0) target = $region5
    $region4: #{tpu_custom_call.1} parent=1 // pred_region
      %s17 = ssub.s32 8192, 8192
      %18 = vsyncadd [#allocation3], %s17
      %s19 = sshll.u32 [#allocation2], 4
      %s20 = int_to_ptr.vmem [resolvable:$true] %s19
      %25 = dma.hbm_to_vmem [thread:$0]  %s0, 8192, %s20, [#allocation3], 256, 256, 16
    $region5: #{tpu_custom_call.1} parent=1 // pred_fallthru
      _
    // Predicated region
    $region6: #{tpu_custom_call.1} parent=1 // pred_check
      _
    $region7: #{tpu_custom_call.1} parent=1 // pred_check_branch
      %27 = sbr.rel (0) target = $region9
    $region8: #{tpu_custom_call.1} parent=1 // pred_region
      %s29 = ssub.s32 8192, 8192
      %30 = vsyncadd [#allocation6], %s29
      %s31 = sshll.u32 [#allocation5], 4
      %s32 = int_to_ptr.vmem [resolvable:$true] %s31
      %37 = dma.hbm_to_vmem [thread:$0]  %s1, 8192, %s32, [#allocation6], 256, 256, 16
    $region9: #{tpu_custom_call.1} parent=1 // pred_fallthru
      _
    // Predicated region
    $region10: #{tpu_custom_call.1} parent=1 // pred_check
      _
    $region11: #{tpu_custom_call.1} parent=1 // pred_check_branch
      %39 = sbr.rel (0) target = $region13
    $region12: #{tpu_custom_call.1} parent=1 // pred_region
      %s41 = ssub.s32 8192, 8192
      %42 = vsyncadd [#allocation6], %s41
      %s43 = sshll.u32 [#allocation7], 4
      %s44 = int_to_ptr.vmem [resolvable:$true] %s43
      %49 = dma.hbm_to_vmem [thread:$0]  %s2, 8192, %s44, [#allocation6], 256, 256, 16
    $region13: #{tpu_custom_call.1} parent=1 // pred_fallthru
      _
    // Predicated region
    $region14: #{tpu_custom_call.1} parent=1 // pred_check
      _
    $region15: #{tpu_custom_call.1} parent=1 // pred_check_branch
      %51 = sbr.rel (0) target = $region17
    $region16: #{tpu_custom_call.1} parent=1 // pred_region
      %52 = dma.done [#allocation3], 8192
    $region17: #{tpu_custom_call.1} parent=1 // pred_fallthru
      _
    // Predicated region
    $region18: #{tpu_custom_call.1} parent=1 // pred_check
      _
    $region19: #{tpu_custom_call.1} parent=1 // pred_check_branch
      %54 = sbr.rel (0) target = $region21
    $region20: #{tpu_custom_call.1} parent=1 // pred_region
      %55 = dma.done [#allocation6], 8192
    $region21: #{tpu_custom_call.1} parent=1 // pred_fallthru
      _
    // Predicated region
    $region22: #{tpu_custom_call.1} parent=1 // pred_check
      _
    $region23: #{tpu_custom_call.1} parent=1 // pred_check_branch
      %57 = sbr.rel (0) target = $region25
    $region24: #{tpu_custom_call.1} parent=1 // pred_region
      %58 = dma.done [#allocation6], 8192
    $region25: #{tpu_custom_call.1} parent=1 // pred_fallthru
      _
    %v59 = vld [vmem:[#allocation2] sm:$0xff]
    %v60 = vld [vmem:[#allocation2 + $0x10] sm:$0xff]
    %v61 = vld [vmem:[#allocation2 + $0x20] sm:$0xff]
    %v62 = vld [vmem:[#allocation2 + $0x30] sm:$0xff]
    %v63 = vld [vmem:[#allocation2 + $0x40] sm:$0xff]
    %v64 = vld [vmem:[#allocation2 + $0x50] sm:$0xff]
    %v65 = vld [vmem:[#allocation2 + $0x60] sm:$0xff]
    %v66 = vld [vmem:[#allocation2 + $0x70] sm:$0xff]
    %v67 = vld [vmem:[#allocation2 + $0x80] sm:$0xff]
    %v68 = vld [vmem:[#allocation2 + $0x90] sm:$0xff]
    %v69 = vld [vmem:[#allocation2 + $0xa0] sm:$0xff]
    %v70 = vld [vmem:[#allocation2 + $0xb0] sm:$0xff]
    %v71 = vld [vmem:[#allocation2 + $0xc0] sm:$0xff]
    %v72 = vld [vmem:[#allocation2 + $0xd0] sm:$0xff]
    %v73 = vld [vmem:[#allocation2 + $0xe0] sm:$0xff]
    %v74 = vld [vmem:[#allocation2 + $0xf0] sm:$0xff]
    %v75 = vld [vmem:[#allocation2 + $0x100] sm:$0xff]
    %v76 = vld [vmem:[#allocation2 + $0x110] sm:$0xff]
    %v77 = vld [vmem:[#allocation2 + $0x120] sm:$0xff]
    %v78 = vld [vmem:[#allocation2 + $0x130] sm:$0xff]
    %v79 = vld [vmem:[#allocation2 + $0x140] sm:$0xff]
    %v80 = vld [vmem:[#allocation2 + $0x150] sm:$0xff]
    %v81 = vld [vmem:[#allocation2 + $0x160] sm:$0xff]
    %v82 = vld [vmem:[#allocation2 + $0x170] sm:$0xff]
    %v83 = vld [vmem:[#allocation2 + $0x180] sm:$0xff]
    %v84 = vld [vmem:[#allocation2 + $0x190] sm:$0xff]
    %v85 = vld [vmem:[#allocation2 + $0x1a0] sm:$0xff]
    %v86 = vld [vmem:[#allocation2 + $0x1b0] sm:$0xff]
    %v87 = vld [vmem:[#allocation2 + $0x1c0] sm:$0xff]
    %v88 = vld [vmem:[#allocation2 + $0x1d0] sm:$0xff]
    %v89 = vld [vmem:[#allocation2 + $0x1e0] sm:$0xff]
    %v90 = vld [vmem:[#allocation2 + $0x1f0] sm:$0xff]
    %v91 = vld [vmem:[#allocation2 + $0x8] sm:$0xff]
    %v92 = vld [vmem:[#allocation2 + $0x18] sm:$0xff]
    %v93 = vld [vmem:[#allocation2 + $0x28] sm:$0xff]
    %v94 = vld [vmem:[#allocation2 + $0x38] sm:$0xff]
    %v95 = vld [vmem:[#allocation2 + $0x48] sm:$0xff]
    %v96 = vld [vmem:[#allocation2 + $0x58] sm:$0xff]
    %v97 = vld [vmem:[#allocation2 + $0x68] sm:$0xff]
    %v98 = vld [vmem:[#allocation2 + $0x78] sm:$0xff]
    %v99 = vld [vmem:[#allocation2 + $0x88] sm:$0xff]
    %v100 = vld [vmem:[#allocation2 + $0x98] sm:$0xff]
    %v101 = vld [vmem:[#allocation2 + $0xa8] sm:$0xff]
    %v102 = vld [vmem:[#allocation2 + $0xb8] sm:$0xff]
    %v103 = vld [vmem:[#allocation2 + $0xc8] sm:$0xff]
    %v104 = vld [vmem:[#allocation2 + $0xd8] sm:$0xff]
    %v105 = vld [vmem:[#allocation2 + $0xe8] sm:$0xff]
    %v106 = vld [vmem:[#allocation2 + $0xf8] sm:$0xff]
    %v107 = vld [vmem:[#allocation2 + $0x108] sm:$0xff]
    %v108 = vld [vmem:[#allocation2 + $0x118] sm:$0xff]
    %v109 = vld [vmem:[#allocation2 + $0x128] sm:$0xff]
    %v110 = vld [vmem:[#allocation2 + $0x138] sm:$0xff]
    %v111 = vld [vmem:[#allocation2 + $0x148] sm:$0xff]
    %v112 = vld [vmem:[#allocation2 + $0x158] sm:$0xff]
    %v113 = vld [vmem:[#allocation2 + $0x168] sm:$0xff]
    %v114 = vld [vmem:[#allocation2 + $0x178] sm:$0xff]
    %v115 = vld [vmem:[#allocation2 + $0x188] sm:$0xff]
    %v116 = vld [vmem:[#allocation2 + $0x198] sm:$0xff]
    %v117 = vld [vmem:[#allocation2 + $0x1a8] sm:$0xff]
    %v118 = vld [vmem:[#allocation2 + $0x1b8] sm:$0xff]
    %v119 = vld [vmem:[#allocation2 + $0x1c8] sm:$0xff]
    %v120 = vld [vmem:[#allocation2 + $0x1d8] sm:$0xff]
    %v121 = vld [vmem:[#allocation2 + $0x1e8] sm:$0xff]
    %v122 = vld [vmem:[#allocation2 + $0x1f8] sm:$0xff]
    %v123 = vld [vmem:[#allocation5] sm:$0xff]
    %v124 = vld [vmem:[#allocation5 + $0x10] sm:$0xff]
    %v125 = vld [vmem:[#allocation5 + $0x20] sm:$0xff]
    %v126 = vld [vmem:[#allocation5 + $0x30] sm:$0xff]
    %v127 = vld [vmem:[#allocation5 + $0x40] sm:$0xff]
    %v128 = vld [vmem:[#allocation5 + $0x50] sm:$0xff]
    %v129 = vld [vmem:[#allocation5 + $0x60] sm:$0xff]
    %v130 = vld [vmem:[#allocation5 + $0x70] sm:$0xff]
    %v131 = vld [vmem:[#allocation5 + $0x80] sm:$0xff]
    %v132 = vld [vmem:[#allocation5 + $0x90] sm:$0xff]
    %v133 = vld [vmem:[#allocation5 + $0xa0] sm:$0xff]
    %v134 = vld [vmem:[#allocation5 + $0xb0] sm:$0xff]
    %v135 = vld [vmem:[#allocation5 + $0xc0] sm:$0xff]
    %v136 = vld [vmem:[#allocation5 + $0xd0] sm:$0xff]
    %v137 = vld [vmem:[#allocation5 + $0xe0] sm:$0xff]
    %v138 = vld [vmem:[#allocation5 + $0xf0] sm:$0xff]
    %v139 = vld [vmem:[#allocation5 + $0x100] sm:$0xff]
    %v140 = vld [vmem:[#allocation5 + $0x110] sm:$0xff]
    %v141 = vld [vmem:[#allocation5 + $0x120] sm:$0xff]
    %v142 = vld [vmem:[#allocation5 + $0x130] sm:$0xff]
    %v143 = vld [vmem:[#allocation5 + $0x140] sm:$0xff]
    %v144 = vld [vmem:[#allocation5 + $0x150] sm:$0xff]
    %v145 = vld [vmem:[#allocation5 + $0x160] sm:$0xff]
    %v146 = vld [vmem:[#allocation5 + $0x170] sm:$0xff]
    %v147 = vld [vmem:[#allocation5 + $0x180] sm:$0xff]
    %v148 = vld [vmem:[#allocation5 + $0x190] sm:$0xff]
    %v149 = vld [vmem:[#allocation5 + $0x1a0] sm:$0xff]
    %v150 = vld [vmem:[#allocation5 + $0x1b0] sm:$0xff]
    %v151 = vld [vmem:[#allocation5 + $0x1c0] sm:$0xff]
    %v152 = vld [vmem:[#allocation5 + $0x1d0] sm:$0xff]
    %v153 = vld [vmem:[#allocation5 + $0x1e0] sm:$0xff]
    %v154 = vld [vmem:[#allocation5 + $0x1f0] sm:$0xff]
    %v155 = vld [vmem:[#allocation5 + $0x8] sm:$0xff]
    %v156 = vld [vmem:[#allocation5 + $0x18] sm:$0xff]
    %v157 = vld [vmem:[#allocation5 + $0x28] sm:$0xff]
    %v158 = vld [vmem:[#allocation5 + $0x38] sm:$0xff]
    %v159 = vld [vmem:[#allocation5 + $0x48] sm:$0xff]
    %v160 = vld [vmem:[#allocation5 + $0x58] sm:$0xff]
    %v161 = vld [vmem:[#allocation5 + $0x68] sm:$0xff]
    %v162 = vld [vmem:[#allocation5 + $0x78] sm:$0xff]
    %v163 = vld [vmem:[#allocation5 + $0x88] sm:$0xff]
    %v164 = vld [vmem:[#allocation5 + $0x98] sm:$0xff]
    %v165 = vld [vmem:[#allocation5 + $0xa8] sm:$0xff]
    %v166 = vld [vmem:[#allocation5 + $0xb8] sm:$0xff]
    %v167 = vld [vmem:[#allocation5 + $0xc8] sm:$0xff]
    %v168 = vld [vmem:[#allocation5 + $0xd8] sm:$0xff]
    %v169 = vld [vmem:[#allocation5 + $0xe8] sm:$0xff]
    %v170 = vld [vmem:[#allocation5 + $0xf8] sm:$0xff]
    %v171 = vld [vmem:[#allocation5 + $0x108] sm:$0xff]
    %v172 = vld [vmem:[#allocation5 + $0x118] sm:$0xff]
    %v173 = vld [vmem:[#allocation5 + $0x128] sm:$0xff]
    %v174 = vld [vmem:[#allocation5 + $0x138] sm:$0xff]
    %v175 = vld [vmem:[#allocation5 + $0x148] sm:$0xff]
    %v176 = vld [vmem:[#allocation5 + $0x158] sm:$0xff]
    %v177 = vld [vmem:[#allocation5 + $0x168] sm:$0xff]
    %v178 = vld [vmem:[#allocation5 + $0x178] sm:$0xff]
    %v179 = vld [vmem:[#allocation5 + $0x188] sm:$0xff]
    %v180 = vld [vmem:[#allocation5 + $0x198] sm:$0xff]
    %v181 = vld [vmem:[#allocation5 + $0x1a8] sm:$0xff]
    %v182 = vld [vmem:[#allocation5 + $0x1b8] sm:$0xff]
    %v183 = vld [vmem:[#allocation5 + $0x1c8] sm:$0xff]
    %v184 = vld [vmem:[#allocation5 + $0x1d8] sm:$0xff]
    %v185 = vld [vmem:[#allocation5 + $0x1e8] sm:$0xff]
    %v186 = vld [vmem:[#allocation5 + $0x1f8] sm:$0xff]
    %v187 = vld [vmem:[#allocation7] sm:$0xff]
    %v188 = vld [vmem:[#allocation7 + $0x10] sm:$0xff]
    %v189 = vld [vmem:[#allocation7 + $0x20] sm:$0xff]
    %v190 = vld [vmem:[#allocation7 + $0x30] sm:$0xff]
    %v191 = vld [vmem:[#allocation7 + $0x40] sm:$0xff]
    %v192 = vld [vmem:[#allocation7 + $0x50] sm:$0xff]
    %v193 = vld [vmem:[#allocation7 + $0x60] sm:$0xff]
    %v194 = vld [vmem:[#allocation7 + $0x70] sm:$0xff]
    %v195 = vld [vmem:[#allocation7 + $0x80] sm:$0xff]
    %v196 = vld [vmem:[#allocation7 + $0x90] sm:$0xff]
    %v197 = vld [vmem:[#allocation7 + $0xa0] sm:$0xff]
    %v198 = vld [vmem:[#allocation7 + $0xb0] sm:$0xff]
    %v199 = vld [vmem:[#allocation7 + $0xc0] sm:$0xff]
    %v200 = vld [vmem:[#allocation7 + $0xd0] sm:$0xff]
    %v201 = vld [vmem:[#allocation7 + $0xe0] sm:$0xff]
    %v202 = vld [vmem:[#allocation7 + $0xf0] sm:$0xff]
    %v203 = vld [vmem:[#allocation7 + $0x100] sm:$0xff]
    %v204 = vld [vmem:[#allocation7 + $0x110] sm:$0xff]
    %v205 = vld [vmem:[#allocation7 + $0x120] sm:$0xff]
    %v206 = vld [vmem:[#allocation7 + $0x130] sm:$0xff]
    %v207 = vld [vmem:[#allocation7 + $0x140] sm:$0xff]
    %v208 = vld [vmem:[#allocation7 + $0x150] sm:$0xff]
    %v209 = vld [vmem:[#allocation7 + $0x160] sm:$0xff]
    %v210 = vld [vmem:[#allocation7 + $0x170] sm:$0xff]
    %v211 = vld [vmem:[#allocation7 + $0x180] sm:$0xff]
    %v212 = vld [vmem:[#allocation7 + $0x190] sm:$0xff]
    %v213 = vld [vmem:[#allocation7 + $0x1a0] sm:$0xff]
    %v214 = vld [vmem:[#allocation7 + $0x1b0] sm:$0xff]
    %v215 = vld [vmem:[#allocation7 + $0x1c0] sm:$0xff]
    %v216 = vld [vmem:[#allocation7 + $0x1d0] sm:$0xff]
    %v217 = vld [vmem:[#allocation7 + $0x1e0] sm:$0xff]
    %v218 = vld [vmem:[#allocation7 + $0x1f0] sm:$0xff]
    %v219 = vld [vmem:[#allocation7 + $0x8] sm:$0xff]
    %v220 = vld [vmem:[#allocation7 + $0x18] sm:$0xff]
    %v221 = vld [vmem:[#allocation7 + $0x28] sm:$0xff]
    %v222 = vld [vmem:[#allocation7 + $0x38] sm:$0xff]
    %v223 = vld [vmem:[#allocation7 + $0x48] sm:$0xff]
    %v224 = vld [vmem:[#allocation7 + $0x58] sm:$0xff]
    %v225 = vld [vmem:[#allocation7 + $0x68] sm:$0xff]
    %v226 = vld [vmem:[#allocation7 + $0x78] sm:$0xff]
    %v227 = vld [vmem:[#allocation7 + $0x88] sm:$0xff]
    %v228 = vld [vmem:[#allocation7 + $0x98] sm:$0xff]
    %v229 = vld [vmem:[#allocation7 + $0xa8] sm:$0xff]
    %v230 = vld [vmem:[#allocation7 + $0xb8] sm:$0xff]
    %v231 = vld [vmem:[#allocation7 + $0xc8] sm:$0xff]
    %v232 = vld [vmem:[#allocation7 + $0xd8] sm:$0xff]
    %v233 = vld [vmem:[#allocation7 + $0xe8] sm:$0xff]
    %v234 = vld [vmem:[#allocation7 + $0xf8] sm:$0xff]
    %v235 = vld [vmem:[#allocation7 + $0x108] sm:$0xff]
    %v236 = vld [vmem:[#allocation7 + $0x118] sm:$0xff]
    %v237 = vld [vmem:[#allocation7 + $0x128] sm:$0xff]
    %v238 = vld [vmem:[#allocation7 + $0x138] sm:$0xff]
    %v239 = vld [vmem:[#allocation7 + $0x148] sm:$0xff]
    %v240 = vld [vmem:[#allocation7 + $0x158] sm:$0xff]
    %v241 = vld [vmem:[#allocation7 + $0x168] sm:$0xff]
    %v242 = vld [vmem:[#allocation7 + $0x178] sm:$0xff]
    %v243 = vld [vmem:[#allocation7 + $0x188] sm:$0xff]
    %v244 = vld [vmem:[#allocation7 + $0x198] sm:$0xff]
    %v245 = vld [vmem:[#allocation7 + $0x1a8] sm:$0xff]
    %v246 = vld [vmem:[#allocation7 + $0x1b8] sm:$0xff]
    %v247 = vld [vmem:[#allocation7 + $0x1c8] sm:$0xff]
    %v248 = vld [vmem:[#allocation7 + $0x1d8] sm:$0xff]
    %v249 = vld [vmem:[#allocation7 + $0x1e8] sm:$0xff]
    %v250 = vld [vmem:[#allocation7 + $0x1f8] sm:$0xff]
    %v251 = vmul.f32 %v123, %v187
    %v252 = vmul.f32 %v124, %v188
    %v253 = vmul.f32 %v125, %v189
    %v254 = vmul.f32 %v126, %v190
    %v255 = vmul.f32 %v127, %v191
    %v256 = vmul.f32 %v128, %v192
    %v257 = vmul.f32 %v129, %v193
    %v258 = vmul.f32 %v130, %v194
    %v259 = vmul.f32 %v131, %v195
    %v260 = vmul.f32 %v132, %v196
    %v261 = vmul.f32 %v133, %v197
    %v262 = vmul.f32 %v134, %v198
    %v263 = vmul.f32 %v135, %v199
    %v264 = vmul.f32 %v136, %v200
    %v265 = vmul.f32 %v137, %v201
    %v266 = vmul.f32 %v138, %v202
    %v267 = vmul.f32 %v139, %v203
    %v268 = vmul.f32 %v140, %v204
    %v269 = vmul.f32 %v141, %v205
    %v270 = vmul.f32 %v142, %v206
    %v271 = vmul.f32 %v143, %v207
    %v272 = vmul.f32 %v144, %v208
    %v273 = vmul.f32 %v145, %v209
    %v274 = vmul.f32 %v146, %v210
    %v275 = vmul.f32 %v147, %v211
    %v276 = vmul.f32 %v148, %v212
    %v277 = vmul.f32 %v149, %v213
    %v278 = vmul.f32 %v150, %v214
    %v279 = vmul.f32 %v151, %v215
    %v280 = vmul.f32 %v152, %v216
    %v281 = vmul.f32 %v153, %v217
    %v282 = vmul.f32 %v154, %v218
    %v283 = vmul.f32 %v155, %v219
    %v284 = vmul.f32 %v156, %v220
    %v285 = vmul.f32 %v157, %v221
    %v286 = vmul.f32 %v158, %v222
    %v287 = vmul.f32 %v159, %v223
    %v288 = vmul.f32 %v160, %v224
    %v289 = vmul.f32 %v161, %v225
    %v290 = vmul.f32 %v162, %v226
    %v291 = vmul.f32 %v163, %v227
    %v292 = vmul.f32 %v164, %v228
    %v293 = vmul.f32 %v165, %v229
    %v294 = vmul.f32 %v166, %v230
    %v295 = vmul.f32 %v167, %v231
    %v296 = vmul.f32 %v168, %v232
    %v297 = vmul.f32 %v169, %v233
    %v298 = vmul.f32 %v170, %v234
    %v299 = vmul.f32 %v171, %v235
    %v300 = vmul.f32 %v172, %v236
    %v301 = vmul.f32 %v173, %v237
    %v302 = vmul.f32 %v174, %v238
    %v303 = vmul.f32 %v175, %v239
    %v304 = vmul.f32 %v176, %v240
    %v305 = vmul.f32 %v177, %v241
    %v306 = vmul.f32 %v178, %v242
    %v307 = vmul.f32 %v179, %v243
    %v308 = vmul.f32 %v180, %v244
    %v309 = vmul.f32 %v181, %v245
    %v310 = vmul.f32 %v182, %v246
    %v311 = vmul.f32 %v183, %v247
    %v312 = vmul.f32 %v184, %v248
    %v313 = vmul.f32 %v185, %v249
    %v314 = vmul.f32 %v186, %v250
    %v315 = vsub.f32 %v251, %v283
    %v316 = vsub.f32 %v252, %v284
    %v317 = vsub.f32 %v253, %v285
    %v318 = vsub.f32 %v254, %v286
    %v319 = vsub.f32 %v255, %v287
    %v320 = vsub.f32 %v256, %v288
    %v321 = vsub.f32 %v257, %v289
    %v322 = vsub.f32 %v258, %v290
    %v323 = vsub.f32 %v259, %v291
    %v324 = vsub.f32 %v260, %v292
    %v325 = vsub.f32 %v261, %v293
    %v326 = vsub.f32 %v262, %v294
    %v327 = vsub.f32 %v263, %v295
    %v328 = vsub.f32 %v264, %v296
    %v329 = vsub.f32 %v265, %v297
    %v330 = vsub.f32 %v266, %v298
    %v331 = vsub.f32 %v267, %v299
    %v332 = vsub.f32 %v268, %v300
    %v333 = vsub.f32 %v269, %v301
    %v334 = vsub.f32 %v270, %v302
    %v335 = vsub.f32 %v271, %v303
    %v336 = vsub.f32 %v272, %v304
    %v337 = vsub.f32 %v273, %v305
    %v338 = vsub.f32 %v274, %v306
    %v339 = vsub.f32 %v275, %v307
    %v340 = vsub.f32 %v276, %v308
    %v341 = vsub.f32 %v277, %v309
    %v342 = vsub.f32 %v278, %v310
    %v343 = vsub.f32 %v279, %v311
    %v344 = vsub.f32 %v280, %v312
    %v345 = vsub.f32 %v281, %v313
    %v346 = vsub.f32 %v282, %v314
    %v347 = vmul.f32 %v155, %v187
    %v348 = vmul.f32 %v156, %v188
    %v349 = vmul.f32 %v157, %v189
    %v350 = vmul.f32 %v158, %v190
    %v351 = vmul.f32 %v159, %v191
    %v352 = vmul.f32 %v160, %v192
    %v353 = vmul.f32 %v161, %v193
    %v354 = vmul.f32 %v162, %v194
    %v355 = vmul.f32 %v163, %v195
    %v356 = vmul.f32 %v164, %v196
    %v357 = vmul.f32 %v165, %v197
    %v358 = vmul.f32 %v166, %v198
    %v359 = vmul.f32 %v167, %v199
    %v360 = vmul.f32 %v168, %v200
    %v361 = vmul.f32 %v169, %v201
    %v362 = vmul.f32 %v170, %v202
    %v363 = vmul.f32 %v171, %v203
    %v364 = vmul.f32 %v172, %v204
    %v365 = vmul.f32 %v173, %v205
    %v366 = vmul.f32 %v174, %v206
    %v367 = vmul.f32 %v175, %v207
    %v368 = vmul.f32 %v176, %v208
    %v369 = vmul.f32 %v177, %v209
    %v370 = vmul.f32 %v178, %v210
    %v371 = vmul.f32 %v179, %v211
    %v372 = vmul.f32 %v180, %v212
    %v373 = vmul.f32 %v181, %v213
    %v374 = vmul.f32 %v182, %v214
    %v375 = vmul.f32 %v183, %v215
    %v376 = vmul.f32 %v184, %v216
    %v377 = vmul.f32 %v185, %v217
    %v378 = vmul.f32 %v186, %v218
    %v379 = vmul.f32 %v123, %v219
    %v380 = vmul.f32 %v124, %v220
    %v381 = vmul.f32 %v125, %v221
    %v382 = vmul.f32 %v126, %v222
    %v383 = vmul.f32 %v127, %v223
    %v384 = vmul.f32 %v128, %v224
    %v385 = vmul.f32 %v129, %v225
    %v386 = vmul.f32 %v130, %v226
    %v387 = vmul.f32 %v131, %v227
    %v388 = vmul.f32 %v132, %v228
    %v389 = vmul.f32 %v133, %v229
    %v390 = vmul.f32 %v134, %v230
    %v391 = vmul.f32 %v135, %v231
    %v392 = vmul.f32 %v136, %v232
    %v393 = vmul.f32 %v137, %v233
    %v394 = vmul.f32 %v138, %v234
    %v395 = vmul.f32 %v139, %v235
    %v396 = vmul.f32 %v140, %v236
    %v397 = vmul.f32 %v141, %v237
    %v398 = vmul.f32 %v142, %v238
    %v399 = vmul.f32 %v143, %v239
    %v400 = vmul.f32 %v144, %v240
    %v401 = vmul.f32 %v145, %v241
    %v402 = vmul.f32 %v146, %v242
    %v403 = vmul.f32 %v147, %v243
    %v404 = vmul.f32 %v148, %v244
    %v405 = vmul.f32 %v149, %v245
    %v406 = vmul.f32 %v150, %v246
    %v407 = vmul.f32 %v151, %v247
    %v408 = vmul.f32 %v152, %v248
    %v409 = vmul.f32 %v153, %v249
    %v410 = vmul.f32 %v154, %v250
    %v411 = vadd.f32 %v347, %v379
    %v412 = vadd.f32 %v348, %v380
    %v413 = vadd.f32 %v349, %v381
    %v414 = vadd.f32 %v350, %v382
    %v415 = vadd.f32 %v351, %v383
    %v416 = vadd.f32 %v352, %v384
    %v417 = vadd.f32 %v353, %v385
    %v418 = vadd.f32 %v354, %v386
    %v419 = vadd.f32 %v355, %v387
    %v420 = vadd.f32 %v356, %v388
    %v421 = vadd.f32 %v357, %v389
    %v422 = vadd.f32 %v358, %v390
    %v423 = vadd.f32 %v359, %v391
    %v424 = vadd.f32 %v360, %v392
    %v425 = vadd.f32 %v361, %v393
    %v426 = vadd.f32 %v362, %v394
    %v427 = vadd.f32 %v363, %v395
    %v428 = vadd.f32 %v364, %v396
    %v429 = vadd.f32 %v365, %v397
    %v430 = vadd.f32 %v366, %v398
    %v431 = vadd.f32 %v367, %v399
    %v432 = vadd.f32 %v368, %v400
    %v433 = vadd.f32 %v369, %v401
    %v434 = vadd.f32 %v370, %v402
    %v435 = vadd.f32 %v371, %v403
    %v436 = vadd.f32 %v372, %v404
    %v437 = vadd.f32 %v373, %v405
    %v438 = vadd.f32 %v374, %v406
    %v439 = vadd.f32 %v375, %v407
    %v440 = vadd.f32 %v376, %v408
    %v441 = vadd.f32 %v377, %v409
    %v442 = vadd.f32 %v378, %v410
    %v443 = vmul.f32 %v315, %v315
    %v444 = vmul.f32 %v316, %v316
    %v445 = vmul.f32 %v317, %v317
    %v446 = vmul.f32 %v318, %v318
    %v447 = vmul.f32 %v319, %v319
    %v448 = vmul.f32 %v320, %v320
    %v449 = vmul.f32 %v321, %v321
    %v450 = vmul.f32 %v322, %v322
    %v451 = vmul.f32 %v323, %v323
    %v452 = vmul.f32 %v324, %v324
    %v453 = vmul.f32 %v325, %v325
    %v454 = vmul.f32 %v326, %v326
    %v455 = vmul.f32 %v327, %v327
    %v456 = vmul.f32 %v328, %v328
    %v457 = vmul.f32 %v329, %v329
    %v458 = vmul.f32 %v330, %v330
    %v459 = vmul.f32 %v331, %v331
    %v460 = vmul.f32 %v332, %v332
    %v461 = vmul.f32 %v333, %v333
    %v462 = vmul.f32 %v334, %v334
    %v463 = vmul.f32 %v335, %v335
    %v464 = vmul.f32 %v336, %v336
    %v465 = vmul.f32 %v337, %v337
    %v466 = vmul.f32 %v338, %v338
    %v467 = vmul.f32 %v339, %v339
    %v468 = vmul.f32 %v340, %v340
    %v469 = vmul.f32 %v341, %v341
    %v470 = vmul.f32 %v342, %v342
    %v471 = vmul.f32 %v343, %v343
    %v472 = vmul.f32 %v344, %v344
    %v473 = vmul.f32 %v345, %v345
    %v474 = vmul.f32 %v346, %v346
    %v475 = vmul.f32 %v411, %v411
    %v476 = vmul.f32 %v412, %v412
    %v477 = vmul.f32 %v413, %v413
    %v478 = vmul.f32 %v414, %v414
    %v479 = vmul.f32 %v415, %v415
    %v480 = vmul.f32 %v416, %v416
    %v481 = vmul.f32 %v417, %v417
    %v482 = vmul.f32 %v418, %v418
    %v483 = vmul.f32 %v419, %v419
    %v484 = vmul.f32 %v420, %v420
    %v485 = vmul.f32 %v421, %v421
    %v486 = vmul.f32 %v422, %v422
    %v487 = vmul.f32 %v423, %v423
    %v488 = vmul.f32 %v424, %v424
    %v489 = vmul.f32 %v425, %v425
    %v490 = vmul.f32 %v426, %v426
    %v491 = vmul.f32 %v427, %v427
    %v492 = vmul.f32 %v428, %v428
    %v493 = vmul.f32 %v429, %v429
    %v494 = vmul.f32 %v430, %v430
    %v495 = vmul.f32 %v431, %v431
    %v496 = vmul.f32 %v432, %v432
    %v497 = vmul.f32 %v433, %v433
    %v498 = vmul.f32 %v434, %v434
    %v499 = vmul.f32 %v435, %v435
    %v500 = vmul.f32 %v436, %v436
    %v501 = vmul.f32 %v437, %v437
    %v502 = vmul.f32 %v438, %v438
    %v503 = vmul.f32 %v439, %v439
    %v504 = vmul.f32 %v440, %v440
    %v505 = vmul.f32 %v441, %v441
    %v506 = vmul.f32 %v442, %v442
    %v507 = vadd.f32 %v443, %v475
    %v508 = vadd.f32 %v444, %v476
    %v509 = vadd.f32 %v445, %v477
    %v510 = vadd.f32 %v446, %v478
    %v511 = vadd.f32 %v447, %v479
    %v512 = vadd.f32 %v448, %v480
    %v513 = vadd.f32 %v449, %v481
    %v514 = vadd.f32 %v450, %v482
    %v515 = vadd.f32 %v451, %v483
    %v516 = vadd.f32 %v452, %v484
    %v517 = vadd.f32 %v453, %v485
    %v518 = vadd.f32 %v454, %v486
    %v519 = vadd.f32 %v455, %v487
    %v520 = vadd.f32 %v456, %v488
    %v521 = vadd.f32 %v457, %v489
    %v522 = vadd.f32 %v458, %v490
    %v523 = vadd.f32 %v459, %v491
    %v524 = vadd.f32 %v460, %v492
    %v525 = vadd.f32 %v461, %v493
    %v526 = vadd.f32 %v462, %v494
    %v527 = vadd.f32 %v463, %v495
    %v528 = vadd.f32 %v464, %v496
    %v529 = vadd.f32 %v465, %v497
    %v530 = vadd.f32 %v466, %v498
    %v531 = vadd.f32 %v467, %v499
    %v532 = vadd.f32 %v468, %v500
    %v533 = vadd.f32 %v469, %v501
    %v534 = vadd.f32 %v470, %v502
    %v535 = vadd.f32 %v471, %v503
    %v536 = vadd.f32 %v472, %v504
    %v537 = vadd.f32 %v473, %v505
    %v538 = vadd.f32 %v474, %v506
    %v539 = vrsqrt.pop %v507
    %v540 = vmul.f32 %v507, %v539
    %vm541 = vcmp.eq.f32.partialorder %v507, inf
    %v542 = vsel %vm541, %v507, %v540
    %vm543 = vcmp.eq.f32.partialorder %v507, 0.0
    %v544 = vand.u32 %v507, 2147483648
    %v545 = vsel %vm543, %v544, %v542
    %v546 = vrsqrt.pop %v508
    %v547 = vmul.f32 %v508, %v546
    %vm548 = vcmp.eq.f32.partialorder %v508, inf
    %v549 = vsel %vm548, %v508, %v547
    %vm550 = vcmp.eq.f32.partialorder %v508, 0.0
    %v551 = vand.u32 %v508, 2147483648
    %v552 = vsel %vm550, %v551, %v549
    %v553 = vrsqrt.pop %v509
    %v554 = vmul.f32 %v509, %v553
    %vm555 = vcmp.eq.f32.partialorder %v509, inf
    %v556 = vsel %vm555, %v509, %v554
    %vm557 = vcmp.eq.f32.partialorder %v509, 0.0
    %v558 = vand.u32 %v509, 2147483648
    %v559 = vsel %vm557, %v558, %v556
    %v560 = vrsqrt.pop %v510
    %v561 = vmul.f32 %v510, %v560
    %vm562 = vcmp.eq.f32.partialorder %v510, inf
    %v563 = vsel %vm562, %v510, %v561
    %vm564 = vcmp.eq.f32.partialorder %v510, 0.0
    %v565 = vand.u32 %v510, 2147483648
    %v566 = vsel %vm564, %v565, %v563
    %v567 = vrsqrt.pop %v511
    %v568 = vmul.f32 %v511, %v567
    %vm569 = vcmp.eq.f32.partialorder %v511, inf
    %v570 = vsel %vm569, %v511, %v568
    %vm571 = vcmp.eq.f32.partialorder %v511, 0.0
    %v572 = vand.u32 %v511, 2147483648
    %v573 = vsel %vm571, %v572, %v570
    %v574 = vrsqrt.pop %v512
    %v575 = vmul.f32 %v512, %v574
    %vm576 = vcmp.eq.f32.partialorder %v512, inf
    %v577 = vsel %vm576, %v512, %v575
    %vm578 = vcmp.eq.f32.partialorder %v512, 0.0
    %v579 = vand.u32 %v512, 2147483648
    %v580 = vsel %vm578, %v579, %v577
    %v581 = vrsqrt.pop %v513
    %v582 = vmul.f32 %v513, %v581
    %vm583 = vcmp.eq.f32.partialorder %v513, inf
    %v584 = vsel %vm583, %v513, %v582
    %vm585 = vcmp.eq.f32.partialorder %v513, 0.0
    %v586 = vand.u32 %v513, 2147483648
    %v587 = vsel %vm585, %v586, %v584
    %v588 = vrsqrt.pop %v514
    %v589 = vmul.f32 %v514, %v588
    %vm590 = vcmp.eq.f32.partialorder %v514, inf
    %v591 = vsel %vm590, %v514, %v589
    %vm592 = vcmp.eq.f32.partialorder %v514, 0.0
    %v593 = vand.u32 %v514, 2147483648
    %v594 = vsel %vm592, %v593, %v591
    %v595 = vrsqrt.pop %v515
    %v596 = vmul.f32 %v515, %v595
    %vm597 = vcmp.eq.f32.partialorder %v515, inf
    %v598 = vsel %vm597, %v515, %v596
    %vm599 = vcmp.eq.f32.partialorder %v515, 0.0
    %v600 = vand.u32 %v515, 2147483648
    %v601 = vsel %vm599, %v600, %v598
    %v602 = vrsqrt.pop %v516
    %v603 = vmul.f32 %v516, %v602
    %vm604 = vcmp.eq.f32.partialorder %v516, inf
    %v605 = vsel %vm604, %v516, %v603
    %vm606 = vcmp.eq.f32.partialorder %v516, 0.0
    %v607 = vand.u32 %v516, 2147483648
    %v608 = vsel %vm606, %v607, %v605
    %v609 = vrsqrt.pop %v517
    %v610 = vmul.f32 %v517, %v609
    %vm611 = vcmp.eq.f32.partialorder %v517, inf
    %v612 = vsel %vm611, %v517, %v610
    %vm613 = vcmp.eq.f32.partialorder %v517, 0.0
    %v614 = vand.u32 %v517, 2147483648
    %v615 = vsel %vm613, %v614, %v612
    %v616 = vrsqrt.pop %v518
    %v617 = vmul.f32 %v518, %v616
    %vm618 = vcmp.eq.f32.partialorder %v518, inf
    %v619 = vsel %vm618, %v518, %v617
    %vm620 = vcmp.eq.f32.partialorder %v518, 0.0
    %v621 = vand.u32 %v518, 2147483648
    %v622 = vsel %vm620, %v621, %v619
    %v623 = vrsqrt.pop %v519
    %v624 = vmul.f32 %v519, %v623
    %vm625 = vcmp.eq.f32.partialorder %v519, inf
    %v626 = vsel %vm625, %v519, %v624
    %vm627 = vcmp.eq.f32.partialorder %v519, 0.0
    %v628 = vand.u32 %v519, 2147483648
    %v629 = vsel %vm627, %v628, %v626
    %v630 = vrsqrt.pop %v520
    %v631 = vmul.f32 %v520, %v630
    %vm632 = vcmp.eq.f32.partialorder %v520, inf
    %v633 = vsel %vm632, %v520, %v631
    %vm634 = vcmp.eq.f32.partialorder %v520, 0.0
    %v635 = vand.u32 %v520, 2147483648
    %v636 = vsel %vm634, %v635, %v633
    %v637 = vrsqrt.pop %v521
    %v638 = vmul.f32 %v521, %v637
    %vm639 = vcmp.eq.f32.partialorder %v521, inf
    %v640 = vsel %vm639, %v521, %v638
    %vm641 = vcmp.eq.f32.partialorder %v521, 0.0
    %v642 = vand.u32 %v521, 2147483648
    %v643 = vsel %vm641, %v642, %v640
    %v644 = vrsqrt.pop %v522
    %v645 = vmul.f32 %v522, %v644
    %vm646 = vcmp.eq.f32.partialorder %v522, inf
    %v647 = vsel %vm646, %v522, %v645
    %vm648 = vcmp.eq.f32.partialorder %v522, 0.0
    %v649 = vand.u32 %v522, 2147483648
    %v650 = vsel %vm648, %v649, %v647
    %v651 = vrsqrt.pop %v523
    %v652 = vmul.f32 %v523, %v651
    %vm653 = vcmp.eq.f32.partialorder %v523, inf
    %v654 = vsel %vm653, %v523, %v652
    %vm655 = vcmp.eq.f32.partialorder %v523, 0.0
    %v656 = vand.u32 %v523, 2147483648
    %v657 = vsel %vm655, %v656, %v654
    %v658 = vrsqrt.pop %v524
    %v659 = vmul.f32 %v524, %v658
    %vm660 = vcmp.eq.f32.partialorder %v524, inf
    %v661 = vsel %vm660, %v524, %v659
    %vm662 = vcmp.eq.f32.partialorder %v524, 0.0
    %v663 = vand.u32 %v524, 2147483648
    %v664 = vsel %vm662, %v663, %v661
    %v665 = vrsqrt.pop %v525
    %v666 = vmul.f32 %v525, %v665
    %vm667 = vcmp.eq.f32.partialorder %v525, inf
    %v668 = vsel %vm667, %v525, %v666
    %vm669 = vcmp.eq.f32.partialorder %v525, 0.0
    %v670 = vand.u32 %v525, 2147483648
    %v671 = vsel %vm669, %v670, %v668
    %v672 = vrsqrt.pop %v526
    %v673 = vmul.f32 %v526, %v672
    %vm674 = vcmp.eq.f32.partialorder %v526, inf
    %v675 = vsel %vm674, %v526, %v673
    %vm676 = vcmp.eq.f32.partialorder %v526, 0.0
    %v677 = vand.u32 %v526, 2147483648
    %v678 = vsel %vm676, %v677, %v675
    %v679 = vrsqrt.pop %v527
    %v680 = vmul.f32 %v527, %v679
    %vm681 = vcmp.eq.f32.partialorder %v527, inf
    %v682 = vsel %vm681, %v527, %v680
    %vm683 = vcmp.eq.f32.partialorder %v527, 0.0
    %v684 = vand.u32 %v527, 2147483648
    %v685 = vsel %vm683, %v684, %v682
    %v686 = vrsqrt.pop %v528
    %v687 = vmul.f32 %v528, %v686
    %vm688 = vcmp.eq.f32.partialorder %v528, inf
    %v689 = vsel %vm688, %v528, %v687
    %vm690 = vcmp.eq.f32.partialorder %v528, 0.0
    %v691 = vand.u32 %v528, 2147483648
    %v692 = vsel %vm690, %v691, %v689
    %v693 = vrsqrt.pop %v529
    %v694 = vmul.f32 %v529, %v693
    %vm695 = vcmp.eq.f32.partialorder %v529, inf
    %v696 = vsel %vm695, %v529, %v694
    %vm697 = vcmp.eq.f32.partialorder %v529, 0.0
    %v698 = vand.u32 %v529, 2147483648
    %v699 = vsel %vm697, %v698, %v696
    %v700 = vrsqrt.pop %v530
    %v701 = vmul.f32 %v530, %v700
    %vm702 = vcmp.eq.f32.partialorder %v530, inf
    %v703 = vsel %vm702, %v530, %v701
    %vm704 = vcmp.eq.f32.partialorder %v530, 0.0
    %v705 = vand.u32 %v530, 2147483648
    %v706 = vsel %vm704, %v705, %v703
    %v707 = vrsqrt.pop %v531
    %v708 = vmul.f32 %v531, %v707
    %vm709 = vcmp.eq.f32.partialorder %v531, inf
    %v710 = vsel %vm709, %v531, %v708
    %vm711 = vcmp.eq.f32.partialorder %v531, 0.0
    %v712 = vand.u32 %v531, 2147483648
    %v713 = vsel %vm711, %v712, %v710
    %v714 = vrsqrt.pop %v532
    %v715 = vmul.f32 %v532, %v714
    %vm716 = vcmp.eq.f32.partialorder %v532, inf
    %v717 = vsel %vm716, %v532, %v715
    %vm718 = vcmp.eq.f32.partialorder %v532, 0.0
    %v719 = vand.u32 %v532, 2147483648
    %v720 = vsel %vm718, %v719, %v717
    %v721 = vrsqrt.pop %v533
    %v722 = vmul.f32 %v533, %v721
    %vm723 = vcmp.eq.f32.partialorder %v533, inf
    %v724 = vsel %vm723, %v533, %v722
    %vm725 = vcmp.eq.f32.partialorder %v533, 0.0
    %v726 = vand.u32 %v533, 2147483648
    %v727 = vsel %vm725, %v726, %v724
    %v728 = vrsqrt.pop %v534
    %v729 = vmul.f32 %v534, %v728
    %vm730 = vcmp.eq.f32.partialorder %v534, inf
    %v731 = vsel %vm730, %v534, %v729
    %vm732 = vcmp.eq.f32.partialorder %v534, 0.0
    %v733 = vand.u32 %v534, 2147483648
    %v734 = vsel %vm732, %v733, %v731
    %v735 = vrsqrt.pop %v535
    %v736 = vmul.f32 %v535, %v735
    %vm737 = vcmp.eq.f32.partialorder %v535, inf
    %v738 = vsel %vm737, %v535, %v736
    %vm739 = vcmp.eq.f32.partialorder %v535, 0.0
    %v740 = vand.u32 %v535, 2147483648
    %v741 = vsel %vm739, %v740, %v738
    %v742 = vrsqrt.pop %v536
    %v743 = vmul.f32 %v536, %v742
    %vm744 = vcmp.eq.f32.partialorder %v536, inf
    %v745 = vsel %vm744, %v536, %v743
    %vm746 = vcmp.eq.f32.partialorder %v536, 0.0
    %v747 = vand.u32 %v536, 2147483648
    %v748 = vsel %vm746, %v747, %v745
    %v749 = vrsqrt.pop %v537
    %v750 = vmul.f32 %v537, %v749
    %vm751 = vcmp.eq.f32.partialorder %v537, inf
    %v752 = vsel %vm751, %v537, %v750
    %vm753 = vcmp.eq.f32.partialorder %v537, 0.0
    %v754 = vand.u32 %v537, 2147483648
    %v755 = vsel %vm753, %v754, %v752
    %v756 = vrsqrt.pop %v538
    %v757 = vmul.f32 %v538, %v756
    %vm758 = vcmp.eq.f32.partialorder %v538, inf
    %v759 = vsel %vm758, %v538, %v757
    %vm760 = vcmp.eq.f32.partialorder %v538, 0.0
    %v761 = vand.u32 %v538, 2147483648
    %v762 = vsel %vm760, %v761, %v759
    %763 = vst [vmem:[#allocation9] sm:$0xff] %v545
    %764 = vst [vmem:[#allocation9 + $0x8] sm:$0xff] %v552
    %765 = vst [vmem:[#allocation9 + $0x10] sm:$0xff] %v559
    %766 = vst [vmem:[#allocation9 + $0x18] sm:$0xff] %v566
    %767 = vst [vmem:[#allocation9 + $0x20] sm:$0xff] %v573
    %768 = vst [vmem:[#allocation9 + $0x28] sm:$0xff] %v580
    %769 = vst [vmem:[#allocation9 + $0x30] sm:$0xff] %v587
    %770 = vst [vmem:[#allocation9 + $0x38] sm:$0xff] %v594
    %771 = vst [vmem:[#allocation9 + $0x40] sm:$0xff] %v601
    %772 = vst [vmem:[#allocation9 + $0x48] sm:$0xff] %v608
    %773 = vst [vmem:[#allocation9 + $0x50] sm:$0xff] %v615
    %774 = vst [vmem:[#allocation9 + $0x58] sm:$0xff] %v622
    %775 = vst [vmem:[#allocation9 + $0x60] sm:$0xff] %v629
    %776 = vst [vmem:[#allocation9 + $0x68] sm:$0xff] %v636
    %777 = vst [vmem:[#allocation9 + $0x70] sm:$0xff] %v643
    %778 = vst [vmem:[#allocation9 + $0x78] sm:$0xff] %v650
    %779 = vst [vmem:[#allocation9 + $0x80] sm:$0xff] %v657
    %780 = vst [vmem:[#allocation9 + $0x88] sm:$0xff] %v664
    %781 = vst [vmem:[#allocation9 + $0x90] sm:$0xff] %v671
    %782 = vst [vmem:[#allocation9 + $0x98] sm:$0xff] %v678
    %783 = vst [vmem:[#allocation9 + $0xa0] sm:$0xff] %v685
    %784 = vst [vmem:[#allocation9 + $0xa8] sm:$0xff] %v692
    %785 = vst [vmem:[#allocation9 + $0xb0] sm:$0xff] %v699
    %786 = vst [vmem:[#allocation9 + $0xb8] sm:$0xff] %v706
    %787 = vst [vmem:[#allocation9 + $0xc0] sm:$0xff] %v713
    %788 = vst [vmem:[#allocation9 + $0xc8] sm:$0xff] %v720
    %789 = vst [vmem:[#allocation9 + $0xd0] sm:$0xff] %v727
    %790 = vst [vmem:[#allocation9 + $0xd8] sm:$0xff] %v734
    %791 = vst [vmem:[#allocation9 + $0xe0] sm:$0xff] %v741
    %792 = vst [vmem:[#allocation9 + $0xe8] sm:$0xff] %v748
    %793 = vst [vmem:[#allocation9 + $0xf0] sm:$0xff] %v755
    %794 = vst [vmem:[#allocation9 + $0xf8] sm:$0xff] %v762
    %v795 = vmul.f32 %v59, %v315
    %v796 = vmul.f32 %v60, %v316
    %v797 = vmul.f32 %v61, %v317
    %v798 = vmul.f32 %v62, %v318
    %v799 = vmul.f32 %v63, %v319
    %v800 = vmul.f32 %v64, %v320
    %v801 = vmul.f32 %v65, %v321
    %v802 = vmul.f32 %v66, %v322
    %v803 = vmul.f32 %v67, %v323
    %v804 = vmul.f32 %v68, %v324
    %v805 = vmul.f32 %v69, %v325
    %v806 = vmul.f32 %v70, %v326
    %v807 = vmul.f32 %v71, %v327
    %v808 = vmul.f32 %v72, %v328
    %v809 = vmul.f32 %v73, %v329
    %v810 = vmul.f32 %v74, %v330
    %v811 = vmul.f32 %v75, %v331
    %v812 = vmul.f32 %v76, %v332
    %v813 = vmul.f32 %v77, %v333
    %v814 = vmul.f32 %v78, %v334
    %v815 = vmul.f32 %v79, %v335
    %v816 = vmul.f32 %v80, %v336
    %v817 = vmul.f32 %v81, %v337
    %v818 = vmul.f32 %v82, %v338
    %v819 = vmul.f32 %v83, %v339
    %v820 = vmul.f32 %v84, %v340
    %v821 = vmul.f32 %v85, %v341
    %v822 = vmul.f32 %v86, %v342
    %v823 = vmul.f32 %v87, %v343
    %v824 = vmul.f32 %v88, %v344
    %v825 = vmul.f32 %v89, %v345
    %v826 = vmul.f32 %v90, %v346
    %v827 = vmul.f32 %v91, %v411
    %v828 = vmul.f32 %v92, %v412
    %v829 = vmul.f32 %v93, %v413
    %v830 = vmul.f32 %v94, %v414
    %v831 = vmul.f32 %v95, %v415
    %v832 = vmul.f32 %v96, %v416
    %v833 = vmul.f32 %v97, %v417
    %v834 = vmul.f32 %v98, %v418
    %v835 = vmul.f32 %v99, %v419
    %v836 = vmul.f32 %v100, %v420
    %v837 = vmul.f32 %v101, %v421
    %v838 = vmul.f32 %v102, %v422
    %v839 = vmul.f32 %v103, %v423
    %v840 = vmul.f32 %v104, %v424
    %v841 = vmul.f32 %v105, %v425
    %v842 = vmul.f32 %v106, %v426
    %v843 = vmul.f32 %v107, %v427
    %v844 = vmul.f32 %v108, %v428
    %v845 = vmul.f32 %v109, %v429
    %v846 = vmul.f32 %v110, %v430
    %v847 = vmul.f32 %v111, %v431
    %v848 = vmul.f32 %v112, %v432
    %v849 = vmul.f32 %v113, %v433
    %v850 = vmul.f32 %v114, %v434
    %v851 = vmul.f32 %v115, %v435
    %v852 = vmul.f32 %v116, %v436
    %v853 = vmul.f32 %v117, %v437
    %v854 = vmul.f32 %v118, %v438
    %v855 = vmul.f32 %v119, %v439
    %v856 = vmul.f32 %v120, %v440
    %v857 = vmul.f32 %v121, %v441
    %v858 = vmul.f32 %v122, %v442
    %v859 = vsub.f32 %v795, %v827
    %v860 = vsub.f32 %v796, %v828
    %v861 = vsub.f32 %v797, %v829
    %v862 = vsub.f32 %v798, %v830
    %v863 = vsub.f32 %v799, %v831
    %v864 = vsub.f32 %v800, %v832
    %v865 = vsub.f32 %v801, %v833
    %v866 = vsub.f32 %v802, %v834
    %v867 = vsub.f32 %v803, %v835
    %v868 = vsub.f32 %v804, %v836
    %v869 = vsub.f32 %v805, %v837
    %v870 = vsub.f32 %v806, %v838
    %v871 = vsub.f32 %v807, %v839
    %v872 = vsub.f32 %v808, %v840
    %v873 = vsub.f32 %v809, %v841
    %v874 = vsub.f32 %v810, %v842
    %v875 = vsub.f32 %v811, %v843
    %v876 = vsub.f32 %v812, %v844
    %v877 = vsub.f32 %v813, %v845
    %v878 = vsub.f32 %v814, %v846
    %v879 = vsub.f32 %v815, %v847
    %v880 = vsub.f32 %v816, %v848
    %v881 = vsub.f32 %v817, %v849
    %v882 = vsub.f32 %v818, %v850
    %v883 = vsub.f32 %v819, %v851
    %v884 = vsub.f32 %v820, %v852
    %v885 = vsub.f32 %v821, %v853
    %v886 = vsub.f32 %v822, %v854
    %v887 = vsub.f32 %v823, %v855
    %v888 = vsub.f32 %v824, %v856
    %v889 = vsub.f32 %v825, %v857
    %v890 = vsub.f32 %v826, %v858
    %v891 = vpack.c.bf16 %v860, %v859
    %v892 = vpack.c.bf16 %v862, %v861
    %v893 = vpack.c.bf16 %v864, %v863
    %v894 = vpack.c.bf16 %v866, %v865
    %v895 = vpack.c.bf16 %v868, %v867
    %v896 = vpack.c.bf16 %v870, %v869
    %v897 = vpack.c.bf16 %v872, %v871
    %v898 = vpack.c.bf16 %v874, %v873
    %v899 = vpack.c.bf16 %v876, %v875
    %v900 = vpack.c.bf16 %v878, %v877
    %v901 = vpack.c.bf16 %v880, %v879
    %v902 = vpack.c.bf16 %v882, %v881
    %v903 = vpack.c.bf16 %v884, %v883
    %v904 = vpack.c.bf16 %v886, %v885
    %v905 = vpack.c.bf16 %v888, %v887
    %v906 = vpack.c.bf16 %v890, %v889
    %v923 = vunpack.c.l.b16 %v891
    %v924 = vunpack.c.h.b16 %v891
    %v925 = vunpack.c.l.b16 %v892
    %v926 = vunpack.c.h.b16 %v892
    %v927 = vunpack.c.l.b16 %v893
    %v928 = vunpack.c.h.b16 %v893
    %v929 = vunpack.c.l.b16 %v894
    %v930 = vunpack.c.h.b16 %v894
    %v931 = vunpack.c.l.b16 %v895
    %v932 = vunpack.c.h.b16 %v895
    %v933 = vunpack.c.l.b16 %v896
    %v934 = vunpack.c.h.b16 %v896
    %v935 = vunpack.c.l.b16 %v897
    %v936 = vunpack.c.h.b16 %v897
    %v937 = vunpack.c.l.b16 %v898
    %v938 = vunpack.c.h.b16 %v898
    %v939 = vunpack.c.l.b16 %v899
    %v940 = vunpack.c.h.b16 %v899
    %v941 = vunpack.c.l.b16 %v900
    %v942 = vunpack.c.h.b16 %v900
    %v943 = vunpack.c.l.b16 %v901
    %v944 = vunpack.c.h.b16 %v901
    %v945 = vunpack.c.l.b16 %v902
    %v946 = vunpack.c.h.b16 %v902
    %v947 = vunpack.c.l.b16 %v903
    %v948 = vunpack.c.h.b16 %v903
    %v949 = vunpack.c.l.b16 %v904
    %v950 = vunpack.c.h.b16 %v904
    %v951 = vunpack.c.l.b16 %v905
    %v952 = vunpack.c.h.b16 %v905
    %v953 = vunpack.c.l.b16 %v906
    %v954 = vunpack.c.h.b16 %v906
    %v955 = vpack.c.b16 %v923, %v923
    %v956 = vpack.c.b16 %v924, %v924
    %v957 = vpack.c.b16 %v925, %v925
    %v958 = vpack.c.b16 %v926, %v926
    %v959 = vpack.c.b16 %v927, %v927
    %v960 = vpack.c.b16 %v928, %v928
    %v961 = vpack.c.b16 %v929, %v929
    %v962 = vpack.c.b16 %v930, %v930
    %v963 = vpack.c.b16 %v931, %v931
    %v964 = vpack.c.b16 %v932, %v932
    %v965 = vpack.c.b16 %v933, %v933
    %v966 = vpack.c.b16 %v934, %v934
    %v967 = vpack.c.b16 %v935, %v935
    %v968 = vpack.c.b16 %v936, %v936
    %v969 = vpack.c.b16 %v937, %v937
    %v970 = vpack.c.b16 %v938, %v938
    %v971 = vpack.c.b16 %v939, %v939
    %v972 = vpack.c.b16 %v940, %v940
    %v973 = vpack.c.b16 %v941, %v941
    %v974 = vpack.c.b16 %v942, %v942
    %v975 = vpack.c.b16 %v943, %v943
    %v976 = vpack.c.b16 %v944, %v944
    %v977 = vpack.c.b16 %v945, %v945
    %v978 = vpack.c.b16 %v946, %v946
    %v979 = vpack.c.b16 %v947, %v947
    %v980 = vpack.c.b16 %v948, %v948
    %v981 = vpack.c.b16 %v949, %v949
    %v982 = vpack.c.b16 %v950, %v950
    %v983 = vpack.c.b16 %v951, %v951
    %v984 = vpack.c.b16 %v952, %v952
    %v985 = vpack.c.b16 %v953, %v953
    %v986 = vpack.c.b16 %v954, %v954
    %1019 = vst [vmem:[#allocation8] sm:$0xf] %v955
    %1020 = vst [vmem:[#allocation8 + $0x8] sm:$0xf] %v956
    %1021 = vst [vmem:[#allocation8 + $0x10] sm:$0xf] %v957
    %1022 = vst [vmem:[#allocation8 + $0x18] sm:$0xf] %v958
    %1023 = vst [vmem:[#allocation8 + $0x20] sm:$0xf] %v959
    %1024 = vst [vmem:[#allocation8 + $0x28] sm:$0xf] %v960
    %1025 = vst [vmem:[#allocation8 + $0x30] sm:$0xf] %v961
    %1026 = vst [vmem:[#allocation8 + $0x38] sm:$0xf] %v962
    %1027 = vst [vmem:[#allocation8 + $0x40] sm:$0xf] %v963
    %1028 = vst [vmem:[#allocation8 + $0x48] sm:$0xf] %v964
    %1029 = vst [vmem:[#allocation8 + $0x50] sm:$0xf] %v965
    %1030 = vst [vmem:[#allocation8 + $0x58] sm:$0xf] %v966
    %1031 = vst [vmem:[#allocation8 + $0x60] sm:$0xf] %v967
    %1032 = vst [vmem:[#allocation8 + $0x68] sm:$0xf] %v968
    %1033 = vst [vmem:[#allocation8 + $0x70] sm:$0xf] %v969
    %1034 = vst [vmem:[#allocation8 + $0x78] sm:$0xf] %v970
    %1035 = vst [vmem:[#allocation8 + $0x80] sm:$0xf] %v971
    %1036 = vst [vmem:[#allocation8 + $0x88] sm:$0xf] %v972
    %1037 = vst [vmem:[#allocation8 + $0x90] sm:$0xf] %v973
    %1038 = vst [vmem:[#allocation8 + $0x98] sm:$0xf] %v974
    %1039 = vst [vmem:[#allocation8 + $0xa0] sm:$0xf] %v975
    %1040 = vst [vmem:[#allocation8 + $0xa8] sm:$0xf] %v976
    %1041 = vst [vmem:[#allocation8 + $0xb0] sm:$0xf] %v977
    %1042 = vst [vmem:[#allocation8 + $0xb8] sm:$0xf] %v978
    %1043 = vst [vmem:[#allocation8 + $0xc0] sm:$0xf] %v979
    %1044 = vst [vmem:[#allocation8 + $0xc8] sm:$0xf] %v980
    %1045 = vst [vmem:[#allocation8 + $0xd0] sm:$0xf] %v981
    %1046 = vst [vmem:[#allocation8 + $0xd8] sm:$0xf] %v982
    %1047 = vst [vmem:[#allocation8 + $0xe0] sm:$0xf] %v983
    %1048 = vst [vmem:[#allocation8 + $0xe8] sm:$0xf] %v984
    %1049 = vst [vmem:[#allocation8 + $0xf0] sm:$0xf] %v985
    %1050 = vst [vmem:[#allocation8 + $0xf8] sm:$0xf] %v986
    %v1051 = vmul.f32 %v91, %v315
    %v1052 = vmul.f32 %v92, %v316
    %v1053 = vmul.f32 %v93, %v317
    %v1054 = vmul.f32 %v94, %v318
    %v1055 = vmul.f32 %v95, %v319
    %v1056 = vmul.f32 %v96, %v320
    %v1057 = vmul.f32 %v97, %v321
    %v1058 = vmul.f32 %v98, %v322
    %v1059 = vmul.f32 %v99, %v323
    %v1060 = vmul.f32 %v100, %v324
    %v1061 = vmul.f32 %v101, %v325
    %v1062 = vmul.f32 %v102, %v326
    %v1063 = vmul.f32 %v103, %v327
    %v1064 = vmul.f32 %v104, %v328
    %v1065 = vmul.f32 %v105, %v329
    %v1066 = vmul.f32 %v106, %v330
    %v1067 = vmul.f32 %v107, %v331
    %v1068 = vmul.f32 %v108, %v332
    %v1069 = vmul.f32 %v109, %v333
    %v1070 = vmul.f32 %v110, %v334
    %v1071 = vmul.f32 %v111, %v335
    %v1072 = vmul.f32 %v112, %v336
    %v1073 = vmul.f32 %v113, %v337
    %v1074 = vmul.f32 %v114, %v338
    %v1075 = vmul.f32 %v115, %v339
    %v1076 = vmul.f32 %v116, %v340
    %v1077 = vmul.f32 %v117, %v341
    %v1078 = vmul.f32 %v118, %v342
    %v1079 = vmul.f32 %v119, %v343
    %v1080 = vmul.f32 %v120, %v344
    %v1081 = vmul.f32 %v121, %v345
    %v1082 = vmul.f32 %v122, %v346
    %v1083 = vmul.f32 %v59, %v411
    %v1084 = vmul.f32 %v60, %v412
    %v1085 = vmul.f32 %v61, %v413
    %v1086 = vmul.f32 %v62, %v414
    %v1087 = vmul.f32 %v63, %v415
    %v1088 = vmul.f32 %v64, %v416
    %v1089 = vmul.f32 %v65, %v417
    %v1090 = vmul.f32 %v66, %v418
    %v1091 = vmul.f32 %v67, %v419
    %v1092 = vmul.f32 %v68, %v420
    %v1093 = vmul.f32 %v69, %v421
    %v1094 = vmul.f32 %v70, %v422
    %v1095 = vmul.f32 %v71, %v423
    %v1096 = vmul.f32 %v72, %v424
    %v1097 = vmul.f32 %v73, %v425
    %v1098 = vmul.f32 %v74, %v426
    %v1099 = vmul.f32 %v75, %v427
    %v1100 = vmul.f32 %v76, %v428
    %v1101 = vmul.f32 %v77, %v429
    %v1102 = vmul.f32 %v78, %v430
    %v1103 = vmul.f32 %v79, %v431
    %v1104 = vmul.f32 %v80, %v432
    %v1105 = vmul.f32 %v81, %v433
    %v1106 = vmul.f32 %v82, %v434
    %v1107 = vmul.f32 %v83, %v435
    %v1108 = vmul.f32 %v84, %v436
    %v1109 = vmul.f32 %v85, %v437
    %v1110 = vmul.f32 %v86, %v438
    %v1111 = vmul.f32 %v87, %v439
    %v1112 = vmul.f32 %v88, %v440
    %v1113 = vmul.f32 %v89, %v441
    %v1114 = vmul.f32 %v90, %v442
    %v1115 = vadd.f32 %v1051, %v1083
    %v1116 = vadd.f32 %v1052, %v1084
    %v1117 = vadd.f32 %v1053, %v1085
    %v1118 = vadd.f32 %v1054, %v1086
    %v1119 = vadd.f32 %v1055, %v1087
    %v1120 = vadd.f32 %v1056, %v1088
    %v1121 = vadd.f32 %v1057, %v1089
    %v1122 = vadd.f32 %v1058, %v1090
    %v1123 = vadd.f32 %v1059, %v1091
    %v1124 = vadd.f32 %v1060, %v1092
    %v1125 = vadd.f32 %v1061, %v1093
    %v1126 = vadd.f32 %v1062, %v1094
    %v1127 = vadd.f32 %v1063, %v1095
    %v1128 = vadd.f32 %v1064, %v1096
    %v1129 = vadd.f32 %v1065, %v1097
    %v1130 = vadd.f32 %v1066, %v1098
    %v1131 = vadd.f32 %v1067, %v1099
    %v1132 = vadd.f32 %v1068, %v1100
    %v1133 = vadd.f32 %v1069, %v1101
    %v1134 = vadd.f32 %v1070, %v1102
    %v1135 = vadd.f32 %v1071, %v1103
    %v1136 = vadd.f32 %v1072, %v1104
    %v1137 = vadd.f32 %v1073, %v1105
    %v1138 = vadd.f32 %v1074, %v1106
    %v1139 = vadd.f32 %v1075, %v1107
    %v1140 = vadd.f32 %v1076, %v1108
    %v1141 = vadd.f32 %v1077, %v1109
    %v1142 = vadd.f32 %v1078, %v1110
    %v1143 = vadd.f32 %v1079, %v1111
    %v1144 = vadd.f32 %v1080, %v1112
    %v1145 = vadd.f32 %v1081, %v1113
    %v1146 = vadd.f32 %v1082, %v1114
    %v1147 = vpack.c.bf16 %v1116, %v1115
    %v1148 = vpack.c.bf16 %v1118, %v1117
    %v1149 = vpack.c.bf16 %v1120, %v1119
    %v1150 = vpack.c.bf16 %v1122, %v1121
    %v1151 = vpack.c.bf16 %v1124, %v1123
    %v1152 = vpack.c.bf16 %v1126, %v1125
    %v1153 = vpack.c.bf16 %v1128, %v1127
    %v1154 = vpack.c.bf16 %v1130, %v1129
    %v1155 = vpack.c.bf16 %v1132, %v1131
    %v1156 = vpack.c.bf16 %v1134, %v1133
    %v1157 = vpack.c.bf16 %v1136, %v1135
    %v1158 = vpack.c.bf16 %v1138, %v1137
    %v1159 = vpack.c.bf16 %v1140, %v1139
    %v1160 = vpack.c.bf16 %v1142, %v1141
    %v1161 = vpack.c.bf16 %v1144, %v1143
    %v1162 = vpack.c.bf16 %v1146, %v1145
    %v1179 = vunpack.c.l.b16 %v1147
    %v1180 = vunpack.c.h.b16 %v1147
    %v1181 = vunpack.c.l.b16 %v1148
    %v1182 = vunpack.c.h.b16 %v1148
    %v1183 = vunpack.c.l.b16 %v1149
    %v1184 = vunpack.c.h.b16 %v1149
    %v1185 = vunpack.c.l.b16 %v1150
    %v1186 = vunpack.c.h.b16 %v1150
    %v1187 = vunpack.c.l.b16 %v1151
    %v1188 = vunpack.c.h.b16 %v1151
    %v1189 = vunpack.c.l.b16 %v1152
    %v1190 = vunpack.c.h.b16 %v1152
    %v1191 = vunpack.c.l.b16 %v1153
    %v1192 = vunpack.c.h.b16 %v1153
    %v1193 = vunpack.c.l.b16 %v1154
    %v1194 = vunpack.c.h.b16 %v1154
    %v1195 = vunpack.c.l.b16 %v1155
    %v1196 = vunpack.c.h.b16 %v1155
    %v1197 = vunpack.c.l.b16 %v1156
    %v1198 = vunpack.c.h.b16 %v1156
    %v1199 = vunpack.c.l.b16 %v1157
    %v1200 = vunpack.c.h.b16 %v1157
    %v1201 = vunpack.c.l.b16 %v1158
    %v1202 = vunpack.c.h.b16 %v1158
    %v1203 = vunpack.c.l.b16 %v1159
    %v1204 = vunpack.c.h.b16 %v1159
    %v1205 = vunpack.c.l.b16 %v1160
    %v1206 = vunpack.c.h.b16 %v1160
    %v1207 = vunpack.c.l.b16 %v1161
    %v1208 = vunpack.c.h.b16 %v1161
    %v1209 = vunpack.c.l.b16 %v1162
    %v1210 = vunpack.c.h.b16 %v1162
    %v1211 = vpack.c.b16 %v1179, %v1179
    %v1212 = vpack.c.b16 %v1180, %v1180
    %v1213 = vpack.c.b16 %v1181, %v1181
    %v1214 = vpack.c.b16 %v1182, %v1182
    %v1215 = vpack.c.b16 %v1183, %v1183
    %v1216 = vpack.c.b16 %v1184, %v1184
    %v1217 = vpack.c.b16 %v1185, %v1185
    %v1218 = vpack.c.b16 %v1186, %v1186
    %v1219 = vpack.c.b16 %v1187, %v1187
    %v1220 = vpack.c.b16 %v1188, %v1188
    %v1221 = vpack.c.b16 %v1189, %v1189
    %v1222 = vpack.c.b16 %v1190, %v1190
    %v1223 = vpack.c.b16 %v1191, %v1191
    %v1224 = vpack.c.b16 %v1192, %v1192
    %v1225 = vpack.c.b16 %v1193, %v1193
    %v1226 = vpack.c.b16 %v1194, %v1194
    %v1227 = vpack.c.b16 %v1195, %v1195
    %v1228 = vpack.c.b16 %v1196, %v1196
    %v1229 = vpack.c.b16 %v1197, %v1197
    %v1230 = vpack.c.b16 %v1198, %v1198
    %v1231 = vpack.c.b16 %v1199, %v1199
    %v1232 = vpack.c.b16 %v1200, %v1200
    %v1233 = vpack.c.b16 %v1201, %v1201
    %v1234 = vpack.c.b16 %v1202, %v1202
    %v1235 = vpack.c.b16 %v1203, %v1203
    %v1236 = vpack.c.b16 %v1204, %v1204
    %v1237 = vpack.c.b16 %v1205, %v1205
    %v1238 = vpack.c.b16 %v1206, %v1206
    %v1239 = vpack.c.b16 %v1207, %v1207
    %v1240 = vpack.c.b16 %v1208, %v1208
    %v1241 = vpack.c.b16 %v1209, %v1209
    %v1242 = vpack.c.b16 %v1210, %v1210
    %1275 = vst [vmem:[#allocation8 + $0x4] sm:$0xf] %v1211
    %1276 = vst [vmem:[#allocation8 + $0xc] sm:$0xf] %v1212
    %1277 = vst [vmem:[#allocation8 + $0x14] sm:$0xf] %v1213
    %1278 = vst [vmem:[#allocation8 + $0x1c] sm:$0xf] %v1214
    %1279 = vst [vmem:[#allocation8 + $0x24] sm:$0xf] %v1215
    %1280 = vst [vmem:[#allocation8 + $0x2c] sm:$0xf] %v1216
    %1281 = vst [vmem:[#allocation8 + $0x34] sm:$0xf] %v1217
    %1282 = vst [vmem:[#allocation8 + $0x3c] sm:$0xf] %v1218
    %1283 = vst [vmem:[#allocation8 + $0x44] sm:$0xf] %v1219
    %1284 = vst [vmem:[#allocation8 + $0x4c] sm:$0xf] %v1220
    %1285 = vst [vmem:[#allocation8 + $0x54] sm:$0xf] %v1221
    %1286 = vst [vmem:[#allocation8 + $0x5c] sm:$0xf] %v1222
    %1287 = vst [vmem:[#allocation8 + $0x64] sm:$0xf] %v1223
    %1288 = vst [vmem:[#allocation8 + $0x6c] sm:$0xf] %v1224
    %1289 = vst [vmem:[#allocation8 + $0x74] sm:$0xf] %v1225
    %1290 = vst [vmem:[#allocation8 + $0x7c] sm:$0xf] %v1226
    %1291 = vst [vmem:[#allocation8 + $0x84] sm:$0xf] %v1227
    %1292 = vst [vmem:[#allocation8 + $0x8c] sm:$0xf] %v1228
    %1293 = vst [vmem:[#allocation8 + $0x94] sm:$0xf] %v1229
    %1294 = vst [vmem:[#allocation8 + $0x9c] sm:$0xf] %v1230
    %1295 = vst [vmem:[#allocation8 + $0xa4] sm:$0xf] %v1231
    %1296 = vst [vmem:[#allocation8 + $0xac] sm:$0xf] %v1232
    %1297 = vst [vmem:[#allocation8 + $0xb4] sm:$0xf] %v1233
    %1298 = vst [vmem:[#allocation8 + $0xbc] sm:$0xf] %v1234
    %1299 = vst [vmem:[#allocation8 + $0xc4] sm:$0xf] %v1235
    %1300 = vst [vmem:[#allocation8 + $0xcc] sm:$0xf] %v1236
    %1301 = vst [vmem:[#allocation8 + $0xd4] sm:$0xf] %v1237
    %1302 = vst [vmem:[#allocation8 + $0xdc] sm:$0xf] %v1238
    %1303 = vst [vmem:[#allocation8 + $0xe4] sm:$0xf] %v1239
    %1304 = vst [vmem:[#allocation8 + $0xec] sm:$0xf] %v1240
    %1305 = vst [vmem:[#allocation8 + $0xf4] sm:$0xf] %v1241
    %1306 = vst [vmem:[#allocation8 + $0xfc] sm:$0xf] %v1242
    // Predicated region
    $region26: #{tpu_custom_call.1} parent=1 // pred_check
      _
    $region27: #{tpu_custom_call.1} parent=1 // pred_check_branch
      %1308 = sbr.rel (0) target = $region29
    $region28: #{tpu_custom_call.1} parent=1 // pred_region
      %s1310 = ssub.s32 4096, 4096
      %1311 = vsyncadd [#allocation4], %s1310
      %s1312 = sshll.u32 [#allocation8], 4
      %s1313 = int_to_ptr.vmem [resolvable:$true] %s1312
      %1318 = dma.vmem_to_hbm [thread:$0]  %s1313, 4096, %s3, [#allocation4], 128, 128, 8
    $region29: #{tpu_custom_call.1} parent=1 // pred_fallthru
      _
    // Predicated region
    $region30: #{tpu_custom_call.1} parent=1 // pred_check
      _
    $region31: #{tpu_custom_call.1} parent=1 // pred_check_branch
      %1320 = sbr.rel (0) target = $region33
    $region32: #{tpu_custom_call.1} parent=1 // pred_region
      %s1322 = ssub.s32 4096, 4096
      %1323 = vsyncadd [#allocation10], %s1322
      %s1324 = sshll.u32 [#allocation9], 4
      %s1325 = int_to_ptr.vmem [resolvable:$true] %s1324
      %1330 = dma.vmem_to_hbm [thread:$0]  %s1325, 4096, %s4, [#allocation10], 128, 128, 8
    $region33: #{tpu_custom_call.1} parent=1 // pred_fallthru
      _
    // Predicated region
    $region34: #{tpu_custom_call.1} parent=1 // pred_check
      _
    $region35: #{tpu_custom_call.1} parent=1 // pred_check_branch
      %1332 = sbr.rel (0) target = $region37
    $region36: #{tpu_custom_call.1} parent=1 // pred_region
      %1333 = dma.done [#allocation4], 4096
    $region37: #{tpu_custom_call.1} parent=1 // pred_fallthru
      _
    // Predicated region
    $region38: #{tpu_custom_call.1} parent=1 // pred_check
      _
    $region39: #{tpu_custom_call.1} parent=1 // pred_check_branch
      %1335 = sbr.rel (0) target = $region41
    $region40: #{tpu_custom_call.1} parent=1 // pred_region
      %1336 = dma.done [#allocation10], 4096
    $region41: #{tpu_custom_call.1} parent=1 // pred_fallthru
      _
    %1337 = vsyncpa [#allocation3], 1
    %1338 = vsyncpa [#allocation6], 1
    %1339 = vsyncpa [#allocation4], 1
    %1340 = vsyncpa [#allocation10], 1

</llo_original>
